<compile_context>
chip_gen: v7x
topology: tpu7x:2x2x1
jax: 0.10.0
libtpu: 0.0.40
codegen_flags: <defaults>
</compile_context>

<pallas_src>
import jax
import jax.numpy as jnp
import numpy as np
from jax.experimental import pallas as pl
from jax.experimental.pallas import tpu as pltpu


# ----------------------------------------------------------------------------
# Helpers
# ----------------------------------------------------------------------------
def _round_up(x, m):
    return ((x + m - 1) // m) * m


def _pick_batch_tile(B, max_tile=256):
    """Single grid step for small batches; otherwise the largest multiple-of-8
    divisor of B in [64, max_tile] (so each step has meaningful MXU work)."""
    if B <= max_tile or B % 8 != 0:
        return B
    for t in range(max_tile, 63, -8):
        if B % t == 0:
            return t
    return B  # no good divisor: one big (still legal) block


def _pick_chunk(last_n_pad, batch_tile):
    """Final-layer N-chunk width: bound the f32 live output to ~32 vregs."""
    budget = 128 * 1024  # 128 KiB of f32 live per chunk
    for c in (last_n_pad, 512, 256, 128):
        if c <= last_n_pad and last_n_pad % c == 0 and batch_tile * c * 4 <= budget:
            return c
    return 128


# ----------------------------------------------------------------------------
# Pallas kernel: fused MLP with in-kernel one-hot fold and chunked last layer
# ----------------------------------------------------------------------------
def _make_decoder_kernel(num_layers, *, conditional, num_labels_pad, d_out,
                         last_n_pad, chunk):
    n_chunks = last_n_pad // chunk

    def kernel(*refs):
        i = 0
        cond_ref = None
        if conditional:
            cond_ref = refs[i]
            i += 1
        x_ref = refs[i]
        i += 1
        out_ref = refs[-1]
        prm = refs[i:-1]

        h = x_ref[...]                                   # bf16 [bt, d_in]
        bt = h.shape[0]

        onehot = None
        if conditional:
            labels = cond_ref[...]                       # int32 [bt, 1]
            iota = jax.lax.broadcasted_iota(jnp.int32, (bt, num_labels_pad), 1)
            onehot = (iota == labels).astype(jnp.bfloat16)   # exact 0/1

        p = 0
        for l in range(num_layers):
            last = (l == num_layers - 1)
            if l == 0 and conditional:
                w, w_c, b = prm[p], prm[p + 1], prm[p + 2]
                p += 3
            else:
                w, w_c, b = prm[p], None, prm[p + 1]
                p += 2

            if not last:
                acc = jnp.dot(h, w[...], preferred_element_type=jnp.float32)
                if w_c is not None:
                    acc = acc + jnp.dot(onehot, w_c[...],
                                        preferred_element_type=jnp.float32)
                acc = acc + b[...]
                h = jnp.maximum(acc, 0.0).astype(jnp.bfloat16)   # ReLU -> bf16
            else:
                # Chunk the wide final layer over N (static, unrolled).
                for c in range(n_chunks):
                    s = c * chunk
                    acc = jnp.dot(h, w[:, s:s + chunk],
                                  preferred_element_type=jnp.float32)
                    if w_c is not None:
                        acc = acc + jnp.dot(onehot, w_c[:, s:s + chunk],
                                            preferred_element_type=jnp.float32)
                    acc = acc + b[:, s:s + chunk]
                    y = jax.nn.sigmoid(acc)              # EUP logistic
                    width = min(chunk, d_out - s)
                    if width > 0:
                        out_ref[:, s:s + width] = y[:, :width].astype(out_ref.dtype)

    return kernel


# ----------------------------------------------------------------------------
# One-time parameter preparation (padding / dtype / layer-0 split)
# ----------------------------------------------------------------------------
def prepare_decoder_params(params, *, conditional, num_labels, latent_size):
    """bf16 weights, f32 (1, N) biases, hidden widths zero-padded to multiples
    of 128, last layer padded to round_up(D_out, 128); layer 0 split into a
    z-part and a label-part when conditional (so the one-hot matmul can be
    done in-kernel)."""
    num_layers = len(params)
    out_pads = [_round_up(w.shape[1], 128) for w, _ in params]
    arrs = []
    for l, (w, b) in enumerate(params):
        in_size, out_size = w.shape
        out_pad = out_pads[l]
        wq = w.astype(jnp.bfloat16)
        bq = b.astype(jnp.float32).reshape(1, -1)
        if out_pad != out_size:
            wq = jnp.pad(wq, ((0, 0), (0, out_pad - out_size)))
            bq = jnp.pad(bq, ((0, 0), (0, out_pad - out_size)))
        if l == 0 and conditional:
            nl_pad = _round_up(num_labels, 128)
            w_z = wq[:latent_size]                       # [latent, out_pad]
            w_c = jnp.pad(wq[latent_size:],              # [nl_pad, out_pad]
                          ((0, nl_pad - num_labels), (0, 0)))
            arrs += [w_z, w_c, bq]
        else:
            if l > 0:
                in_pad = out_pads[l - 1]
                if in_pad != in_size:
                    wq = jnp.pad(wq, ((0, in_pad - in_size), (0, 0)))
            arrs += [wq, bq]
    meta = dict(num_layers=num_layers,
                d_out=int(params[-1][0].shape[1]),
                last_n_pad=out_pads[-1],
                num_labels_pad=_round_up(num_labels, 128) if conditional else 0,
                conditional=conditional)
    return arrs, meta


# ----------------------------------------------------------------------------
# Wrapper around pallas_call
# ----------------------------------------------------------------------------
def decoder_pallas(z, cond, prepped, *, batch_tile=None, max_batch_tile=256):
    arrs, meta = prepped
    B, d_in = z.shape
    conditional = meta["conditional"]
    num_layers = meta["num_layers"]
    d_out = meta["d_out"]
    last_n_pad = meta["last_n_pad"]

    if batch_tile is None:
        # NOTE: use max_batch_tile=128 when tuning specifically for v5e.
        batch_tile = _pick_batch_tile(B, max_batch_tile)
    assert B % batch_tile == 0
    chunk = _pick_chunk(last_n_pad, batch_tile)

    x = z.astype(jnp.bfloat16)                           # halve the x DMA

    inputs, in_specs = [], []
    if conditional:
        cond2d = jnp.asarray(cond, jnp.int32).reshape(B, 1)
        inputs.append(cond2d)
        in_specs.append(pl.BlockSpec((batch_tile, 1), lambda i: (i, 0)))
    inputs.append(x)
    in_specs.append(pl.BlockSpec((batch_tile, d_in), lambda i: (i, 0)))
    for a in arrs:                                       # constant, resident
        inputs.append(a)
        in_specs.append(pl.BlockSpec(a.shape, lambda i: (0, 0),
                                     pipeline_mode=pl.Buffered(1)))

    kernel = _make_decoder_kernel(
        num_layers, conditional=conditional,
        num_labels_pad=meta["num_labels_pad"], d_out=d_out,
        last_n_pad=last_n_pad, chunk=chunk)

    # --- VMEM guard + cost estimate -----------------------------------------
    weight_bytes = sum(int(a.size) * a.dtype.itemsize for a in arrs)
    io_tile_bytes = batch_tile * (d_in * 2 + d_out * 4 + 4)
    resident = weight_bytes + 2 * io_tile_bytes + (2 << 20)
    assert resident < 40 * 2**20, (
        "Decoder too wide for the all-weights-resident design; tile wide "
        "layers along N with an extra grid axis instead.")
    # TODO(synk): on v7x, fp8(e4m3)+per-layer-scale weights would halve the
    # dominant weight DMA at small batch; not applicable to v5e/v6e.
    cp_kwargs = dict(dimension_semantics=("parallel",))
    # TODO(synk): for true cross-TensorCore sharding on v7x use CORE_PARALLEL
    # on the batch axis once each core gets >=128 rows.
    if resident > 16 * 2**20:
        cp_kwargs["vmem_limit_bytes"] = int(min(48 * 2**20, resident + (8 << 20)))

    flops = sum(2 * B * a.shape[0] * a.shape[1] for a in arrs if a.shape[0] > 1)
    bytes_accessed = (weight_bytes + int(x.size) * 2 + B * d_out * 4
                      + (B * 4 if conditional else 0))
    cost = pl.CostEstimate(flops=flops, transcendentals=B * last_n_pad,
                           bytes_accessed=bytes_accessed)

    out = pl.pallas_call(
        kernel,
        out_shape=jax.ShapeDtypeStruct((B, d_out), jnp.float32),
        grid=(B // batch_tile,),
        in_specs=in_specs,
        out_specs=pl.BlockSpec((batch_tile, d_out), lambda i: (i, 0)),
        compiler_params=pltpu.CompilerParams(**cp_kwargs),
        cost_estimate=cost,
    )(*inputs)
    return out


def decoder_forward(z, cond, prepped):
    # TODO(synk): PyTorch's idx2onehot raises on out-of-range labels; there is
    # no device-side raise, out-of-range labels simply yield a zero one-hot.
    return decoder_pallas(z, cond, prepped)


# ----------------------------------------------------------------------------
# Pure-JAX reference (same bf16-weight / f32-accumulate numerics as the kernel)
# ----------------------------------------------------------------------------
def decoder_forward_ref(z, cond, params, *, conditional, num_labels):
    if conditional:
        oh = jax.nn.one_hot(jnp.asarray(cond).reshape(-1), num_labels,
                            dtype=jnp.float32)
        x = jnp.concatenate([z, oh], axis=-1)
    else:
        x = z
    h = x
    for l, (w, b) in enumerate(params):
        a = jnp.dot(h.astype(jnp.bfloat16), w.astype(jnp.bfloat16),
                    preferred_element_type=jnp.float32) + b.astype(jnp.float32)
        h = jnp.maximum(a, 0.0) if l + 1 < len(params) else jax.nn.sigmoid(a)
    return h


def init_decoder_params(key, layer_sizes, latent_size, conditional, num_labels):
    """PyTorch-Linear-style init: U(-1/sqrt(in), 1/sqrt(in)); W stored [in, out]."""
    input_size = latent_size + num_labels if conditional else latent_size
    sizes = [input_size] + list(layer_sizes)
    params = []
    for in_size, out_size in zip(sizes[:-1], sizes[1:]):
        key, kw, kb = jax.random.split(key, 3)
        bound = 1.0 / np.sqrt(in_size)
        w = jax.random.uniform(kw, (in_size, out_size), jnp.float32, -bound, bound)
        b = jax.random.uniform(kb, (out_size,), jnp.float32, -bound, bound)
        params.append((w, b))
    return params


# ----------------------------------------------------------------------------
if __name__ == "__main__":
    # Small CVAE decoder config: latent 16, labels 10, MLP [64, 128, 784]
    layer_sizes = [64, 128, 784]          # final 784 -> 28x28 reconstruction
    latent_size = 16
    num_labels = 10
    conditional = True
    batch = 16                            # B <= 256 -> single grid step

    key = jax.random.PRNGKey(0)
    kz, kc, kp = jax.random.split(key, 3)

    z = jax.random.normal(kz, (batch, latent_size), dtype=jnp.float32)
    cond = jax.random.randint(kc, (batch,), 0, num_labels, dtype=jnp.int32)

    params = init_decoder_params(kp, layer_sizes, latent_size, conditional,
                                 num_labels)
    prepped = prepare_decoder_params(params, conditional=conditional,
                                     num_labels=num_labels,
                                     latent_size=latent_size)

    out = decoder_forward(z, cond, prepped)
    out = jax.block_until_ready(out)

    ref = decoder_forward_ref(z, cond, params, conditional=conditional,
                              num_labels=num_labels)
    np.testing.assert_allclose(np.asarray(out), np.asarray(ref),
                               rtol=2e-3, atol=2e-3)
    assert out.shape == (batch, layer_sizes[-1])

    print("KERNEL_OK")
</pallas_src>

<mosaic_0001>
module attributes {stable_mosaic.version = 11 : i64} {
  func.func @kernel(%arg0: i32, %arg1: memref<16x1xi32, #tpu.memory_space<vmem>>, %arg2: memref<16x16xbf16, #tpu.memory_space<vmem>>, %arg3: memref<16x128xbf16, #tpu.memory_space<vmem>>, %arg4: memref<128x128xbf16, #tpu.memory_space<vmem>>, %arg5: memref<1x128xf32, #tpu.memory_space<vmem>>, %arg6: memref<128x128xbf16, #tpu.memory_space<vmem>>, %arg7: memref<1x128xf32, #tpu.memory_space<vmem>>, %arg8: memref<128x896xbf16, #tpu.memory_space<vmem>>, %arg9: memref<1x896xf32, #tpu.memory_space<vmem>>, %arg10: memref<16x784xf32, #tpu.memory_space<vmem>>) attributes {dimension_semantics = [#tpu.dimension_semantics<parallel>], iteration_bounds = array<i64: 1>, scalar_prefetch = 0 : i64, scratch_operands = 0 : i64, tpu.core_type = #tpu.core_type<tc>, window_params = [{transform_indices = @transform_0, window_bounds = array<i64: 16, 1>}, {transform_indices = @transform_1, window_bounds = array<i64: 16, 16>}, {pipeline_mode = #tpu.pipeline_mode<synchronous>, transform_indices = @transform_2, window_bounds = array<i64: 16, 128>}, {pipeline_mode = #tpu.pipeline_mode<synchronous>, transform_indices = @transform_3, window_bounds = array<i64: 128, 128>}, {pipeline_mode = #tpu.pipeline_mode<synchronous>, transform_indices = @transform_4, window_bounds = array<i64: 1, 128>}, {pipeline_mode = #tpu.pipeline_mode<synchronous>, transform_indices = @transform_5, window_bounds = array<i64: 128, 128>}, {pipeline_mode = #tpu.pipeline_mode<synchronous>, transform_indices = @transform_6, window_bounds = array<i64: 1, 128>}, {pipeline_mode = #tpu.pipeline_mode<synchronous>, transform_indices = @transform_7, window_bounds = array<i64: 128, 896>}, {pipeline_mode = #tpu.pipeline_mode<synchronous>, transform_indices = @transform_8, window_bounds = array<i64: 1, 896>}, {transform_indices = @transform_9, window_bounds = array<i64: 16, 784>}]} {
    %c0 = arith.constant 0 : index
    %c0_0 = arith.constant 0 : index
    %0 = vector.load %arg2[%c0, %c0_0] : memref<16x16xbf16, #tpu.memory_space<vmem>>, vector<16x16xbf16>
    %c0_1 = arith.constant 0 : index
    %c0_2 = arith.constant 0 : index
    %1 = vector.load %arg1[%c0_1, %c0_2] : memref<16x1xi32, #tpu.memory_space<vmem>>, vector<16x1xi32>
    %2 = tpu.iota {dimensions = array<i32: 1>} : vector<16x128xi32>
    %3 = vector.broadcast %1 : vector<16x1xi32> to vector<16x128xi32>
    %4 = arith.cmpi eq, %2, %3 : vector<16x128xi32>
    %5 = arith.extui %4 : vector<16x128xi1> to vector<16x128xi32>
    %6 = arith.sitofp %5 : vector<16x128xi32> to vector<16x128xf32>
    %7 = arith.truncf %6 : vector<16x128xf32> to vector<16x128xbf16>
    %c0_3 = arith.constant 0 : index
    %c0_4 = arith.constant 0 : index
    %8 = vector.load %arg3[%c0_3, %c0_4] : memref<16x128xbf16, #tpu.memory_space<vmem>>, vector<16x128xbf16>
    %cst = arith.constant dense<0.000000e+00> : vector<16x128xf32>
    %9 = tpu.matmul %0, %8, %cst {dimension_numbers = #tpu.dot_dimension_numbers<[1], [0], [0], [1], [0, 0, 1, 1], [], []>} : vector<16x16xbf16>, vector<16x128xbf16>, vector<16x128xf32> -> vector<16x128xf32>
    %c0_5 = arith.constant 0 : index
    %c0_6 = arith.constant 0 : index
    %10 = vector.load %arg4[%c0_5, %c0_6] : memref<128x128xbf16, #tpu.memory_space<vmem>>, vector<128x128xbf16>
    %cst_7 = arith.constant dense<0.000000e+00> : vector<16x128xf32>
    %11 = tpu.matmul %7, %10, %cst_7 {dimension_numbers = #tpu.dot_dimension_numbers<[1], [0], [0], [1], [0, 0, 1, 1], [], []>} : vector<16x128xbf16>, vector<128x128xbf16>, vector<16x128xf32> -> vector<16x128xf32>
    %12 = arith.addf %9, %11 : vector<16x128xf32>
    %c0_8 = arith.constant 0 : index
    %c0_9 = arith.constant 0 : index
    %13 = vector.load %arg5[%c0_8, %c0_9] : memref<1x128xf32, #tpu.memory_space<vmem>>, vector<1x128xf32>
    %14 = vector.broadcast %13 : vector<1x128xf32> to vector<16x128xf32>
    %15 = arith.addf %12, %14 : vector<16x128xf32>
    %cst_10 = arith.constant 0.000000e+00 : f32
    %16 = vector.broadcast %cst_10 : f32 to vector<16x128xf32>
    %17 = arith.maximumf %15, %16 : vector<16x128xf32>
    %18 = arith.truncf %17 : vector<16x128xf32> to vector<16x128xbf16>
    %c0_11 = arith.constant 0 : index
    %c0_12 = arith.constant 0 : index
    %19 = vector.load %arg6[%c0_11, %c0_12] : memref<128x128xbf16, #tpu.memory_space<vmem>>, vector<128x128xbf16>
    %cst_13 = arith.constant dense<0.000000e+00> : vector<16x128xf32>
    %20 = tpu.matmul %18, %19, %cst_13 {dimension_numbers = #tpu.dot_dimension_numbers<[1], [0], [0], [1], [0, 0, 1, 1], [], []>} : vector<16x128xbf16>, vector<128x128xbf16>, vector<16x128xf32> -> vector<16x128xf32>
    %c0_14 = arith.constant 0 : index
    %c0_15 = arith.constant 0 : index
    %21 = vector.load %arg7[%c0_14, %c0_15] : memref<1x128xf32, #tpu.memory_space<vmem>>, vector<1x128xf32>
    %22 = vector.broadcast %21 : vector<1x128xf32> to vector<16x128xf32>
    %23 = arith.addf %20, %22 : vector<16x128xf32>
    %cst_16 = arith.constant 0.000000e+00 : f32
    %24 = vector.broadcast %cst_16 : f32 to vector<16x128xf32>
    %25 = arith.maximumf %23, %24 : vector<16x128xf32>
    %26 = arith.truncf %25 : vector<16x128xf32> to vector<16x128xbf16>
    %c0_17 = arith.constant 0 : index
    %c0_18 = arith.constant 0 : index
    %27 = vector.load %arg8[%c0_17, %c0_18] : memref<128x896xbf16, #tpu.memory_space<vmem>>, vector<128x896xbf16>
    %cst_19 = arith.constant dense<0.000000e+00> : vector<16x896xf32>
    %28 = tpu.matmul %26, %27, %cst_19 {dimension_numbers = #tpu.dot_dimension_numbers<[1], [0], [0], [1], [0, 0, 1, 1], [], []>} : vector<16x128xbf16>, vector<128x896xbf16>, vector<16x896xf32> -> vector<16x896xf32>
    %c0_20 = arith.constant 0 : index
    %c0_21 = arith.constant 0 : index
    %29 = vector.load %arg9[%c0_20, %c0_21] : memref<1x896xf32, #tpu.memory_space<vmem>>, vector<1x896xf32>
    %30 = vector.broadcast %29 : vector<1x896xf32> to vector<16x896xf32>
    %31 = arith.addf %28, %30 : vector<16x896xf32>
    %32 = arith.negf %31 : vector<16x896xf32>
    %33 = math.exp %32 : vector<16x896xf32>
    %cst_22 = arith.constant 1.000000e+00 : f32
    %34 = vector.broadcast %cst_22 : f32 to vector<16x896xf32>
    %35 = arith.addf %34, %33 : vector<16x896xf32>
    %36 = arith.divf %34, %35 : vector<16x896xf32>
    %37 = vector.extract_strided_slice %36 {offsets = [0, 0], sizes = [16, 784], strides = [1, 1]} : vector<16x896xf32> to vector<16x784xf32>
    %c0_23 = arith.constant 0 : index
    %c0_24 = arith.constant 0 : index
    %38 = vector.load %arg10[%c0_23, %c0_24] : memref<16x784xf32, #tpu.memory_space<vmem>>, vector<16x784xf32>
    tpu.vector_store %arg10[%c0_23, %c0_24], %37 {strides = array<i32>} : memref<16x784xf32, #tpu.memory_space<vmem>>, vector<16x784xf32>,
    return
  }
  func.func @transform_0(%arg0: i32) -> (i32, i32) {
    %c0_i32 = arith.constant 0 : i32
    %c0_i32_0 = arith.constant 0 : i32
    return %arg0, %c0_i32 : i32, i32
  }
  func.func @transform_1(%arg0: i32) -> (i32, i32) {
    %c0_i32 = arith.constant 0 : i32
    %c0_i32_0 = arith.constant 0 : i32
    return %arg0, %c0_i32 : i32, i32
  }
  func.func @transform_2(%arg0: i32) -> (i32, i32) {
    %c0_i32 = arith.constant 0 : i32
    %c0_i32_0 = arith.constant 0 : i32
    %c0_i32_1 = arith.constant 0 : i32
    return %c0_i32, %c0_i32_0 : i32, i32
  }
  func.func @transform_3(%arg0: i32) -> (i32, i32) {
    %c0_i32 = arith.constant 0 : i32
    %c0_i32_0 = arith.constant 0 : i32
    %c0_i32_1 = arith.constant 0 : i32
    return %c0_i32, %c0_i32_0 : i32, i32
  }
  func.func @transform_4(%arg0: i32) -> (i32, i32) {
    %c0_i32 = arith.constant 0 : i32
    %c0_i32_0 = arith.constant 0 : i32
    %c0_i32_1 = arith.constant 0 : i32
    return %c0_i32, %c0_i32_0 : i32, i32
  }
  func.func @transform_5(%arg0: i32) -> (i32, i32) {
    %c0_i32 = arith.constant 0 : i32
    %c0_i32_0 = arith.constant 0 : i32
    %c0_i32_1 = arith.constant 0 : i32
    return %c0_i32, %c0_i32_0 : i32, i32
  }
  func.func @transform_6(%arg0: i32) -> (i32, i32) {
    %c0_i32 = arith.constant 0 : i32
    %c0_i32_0 = arith.constant 0 : i32
    %c0_i32_1 = arith.constant 0 : i32
    return %c0_i32, %c0_i32_0 : i32, i32
  }
  func.func @transform_7(%arg0: i32) -> (i32, i32) {
    %c0_i32 = arith.constant 0 : i32
    %c0_i32_0 = arith.constant 0 : i32
    %c0_i32_1 = arith.constant 0 : i32
    return %c0_i32, %c0_i32_0 : i32, i32
  }
  func.func @transform_8(%arg0: i32) -> (i32, i32) {
    %c0_i32 = arith.constant 0 : i32
    %c0_i32_0 = arith.constant 0 : i32
    %c0_i32_1 = arith.constant 0 : i32
    return %c0_i32, %c0_i32_0 : i32, i32
  }
  func.func @transform_9(%arg0: i32) -> (i32, i32) {
    %c0_i32 = arith.constant 0 : i32
    %c0_i32_0 = arith.constant 0 : i32
    return %arg0, %c0_i32 : i32, i32
  }
}

</mosaic_0001>

<llo_original>
// kernel: tpu_custom_call.1
$region0: #{tpu_custom_call.1}
  #allocation0 [shape = 'u32[]', space=smem, size = 0x4, offset = 0x4, fixed_abs, tag = 'smem constant byte address 0x4 - core index']
  #allocation1 [shape = 'u32[144,128]{1,0:T(1,128)}', space=vmem, size = 0x12000, scoped, tag = 'internal scratch']
  %s0 = inlined_call_operand.vmem [shape: s32[16,1], index: 0, kind: input, shape index: {}]
  %s1 = inlined_call_operand.vmem [shape: bf16[16,16], index: 1, kind: input, shape index: {}]
  %s2 = inlined_call_operand.vmem [shape: bf16[16,128], index: 2, kind: input, shape index: {}]
  %s3 = inlined_call_operand.hbm [shape: bf16[128,128], index: 3, kind: input, shape index: {}]
  %s4 = inlined_call_operand.vmem [shape: f32[1,128], index: 4, kind: input, shape index: {}]
  %s5 = inlined_call_operand.hbm [shape: bf16[128,128], index: 5, kind: input, shape index: {}]
  %s6 = inlined_call_operand.vmem [shape: f32[1,128], index: 6, kind: input, shape index: {}]
  %s7 = inlined_call_operand.hbm [shape: bf16[128,896], index: 7, kind: input, shape index: {}]
  %s8 = inlined_call_operand.vmem [shape: f32[1,896], index: 8, kind: input, shape index: {}]
  %s9 = inlined_call_operand.hbm [shape: f32[16,784], index: 9, kind: output, shape index: {}]
  %s10 = sld [smem:[#allocation0]]
  $region58: #{tpu_custom_call.1} parent=0
    _
  %s12 = ssub.s32 1, %s10
  %s13 = scalar_select 0, %s12, %s10
  $region1: #{tpu_custom_call.1} parent=0
    #allocation2 [shape = 'u8[32768]{0}', space=vmem, size = 0x8000, scoped, tag = 'input window, operand 3, single buffered']
    #allocation3 [shape = 's32[1]{0}', space=sflag, size = 0x4, scoped, tag = 'scoped memory for tpu_custom_call.1']
    #allocation4 [shape = 's32[1]{0}', space=sflag, size = 0x4, scoped, tag = 'scoped memory for tpu_custom_call.1']
    #allocation5 [shape = 'u8[32768]{0}', space=vmem, size = 0x8000, scoped, tag = 'input window, operand 5, single buffered']
    #allocation6 [shape = 's32[1]{0}', space=sflag, size = 0x4, scoped, tag = 'scoped memory for tpu_custom_call.1']
    #allocation7 [shape = 'u8[229376]{0}', space=vmem, size = 0x38000, scoped, tag = 'input window, operand 7, single buffered']
    #allocation8 [shape = 'u8[57344]{0}', space=vmem, size = 0xe000, scoped, tag = 'output window, operand 0, single buffered']
    %14 = vsyncpa [#allocation3], 0
    %15 = vsyncpa [#allocation6], 0
    %16 = vsyncpa [#allocation4], 0
    // Predicated region
    $region2: #{tpu_custom_call.1} parent=1 // pred_check
      _
    $region3: #{tpu_custom_call.1} parent=1 // pred_check_branch
      %18 = sbr.rel (0) target = $region5
    $region4: #{tpu_custom_call.1} parent=1 // pred_region
      _
    $region5: #{tpu_custom_call.1} parent=1 // pred_fallthru
      _
    // Predicated region
    $region6: #{tpu_custom_call.1} parent=1 // pred_check
      _
    $region7: #{tpu_custom_call.1} parent=1 // pred_check_branch
      %20 = sbr.rel (0) target = $region9
    $region8: #{tpu_custom_call.1} parent=1 // pred_region
      _
    $region9: #{tpu_custom_call.1} parent=1 // pred_fallthru
      _
    // Predicated region
    $region10: #{tpu_custom_call.1} parent=1 // pred_check
      _
    $region11: #{tpu_custom_call.1} parent=1 // pred_check_branch
      %22 = sbr.rel (0) target = $region13
    $region12: #{tpu_custom_call.1} parent=1 // pred_region
      _
    $region13: #{tpu_custom_call.1} parent=1 // pred_fallthru
      _
    // Predicated region
    $region14: #{tpu_custom_call.1} parent=1 // pred_check
      _
    $region15: #{tpu_custom_call.1} parent=1 // pred_check_branch
      %24 = sbr.rel (0) target = $region17
    $region16: #{tpu_custom_call.1} parent=1 // pred_region
      %s26 = ssub.s32 1024, 1024
      %27 = vsyncadd [#allocation3], %s26
      %s28 = sshll.u32 [#allocation2], 4
      %s29 = int_to_ptr.vmem [resolvable:$true] %s28
      %34 = dma.hbm_to_vmem [thread:$0]  %s3, 1024, %s29, [#allocation3], 64, 64, 4
    $region17: #{tpu_custom_call.1} parent=1 // pred_fallthru
      _
    // Predicated region
    $region18: #{tpu_custom_call.1} parent=1 // pred_check
      _
    $region19: #{tpu_custom_call.1} parent=1 // pred_check_branch
      %36 = sbr.rel (0) target = $region21
    $region20: #{tpu_custom_call.1} parent=1 // pred_region
      _
    $region21: #{tpu_custom_call.1} parent=1 // pred_fallthru
      _
    // Predicated region
    $region22: #{tpu_custom_call.1} parent=1 // pred_check
      _
    $region23: #{tpu_custom_call.1} parent=1 // pred_check_branch
      %38 = sbr.rel (0) target = $region25
    $region24: #{tpu_custom_call.1} parent=1 // pred_region
      %s40 = ssub.s32 1024, 1024
      %41 = vsyncadd [#allocation6], %s40
      %s42 = sshll.u32 [#allocation5], 4
      %s43 = int_to_ptr.vmem [resolvable:$true] %s42
      %48 = dma.hbm_to_vmem [thread:$0]  %s5, 1024, %s43, [#allocation6], 64, 64, 4
    $region25: #{tpu_custom_call.1} parent=1 // pred_fallthru
      _
    // Predicated region
    $region26: #{tpu_custom_call.1} parent=1 // pred_check
      _
    $region27: #{tpu_custom_call.1} parent=1 // pred_check_branch
      %50 = sbr.rel (0) target = $region29
    $region28: #{tpu_custom_call.1} parent=1 // pred_region
      _
    $region29: #{tpu_custom_call.1} parent=1 // pred_fallthru
      _
    // Predicated region
    $region30: #{tpu_custom_call.1} parent=1 // pred_check
      _
    $region31: #{tpu_custom_call.1} parent=1 // pred_check_branch
      %52 = sbr.rel (0) target = $region33
    $region32: #{tpu_custom_call.1} parent=1 // pred_region
      %s54 = ssub.s32 7168, 7168
      %55 = vsyncadd [#allocation6], %s54
      %s56 = sshll.u32 [#allocation7], 4
      %s57 = int_to_ptr.vmem [resolvable:$true] %s56
      %62 = dma.hbm_to_vmem [thread:$0]  %s7, 7168, %s57, [#allocation6], 448, 448, 28
    $region33: #{tpu_custom_call.1} parent=1 // pred_fallthru
      _
    // Predicated region
    $region34: #{tpu_custom_call.1} parent=1 // pred_check
      _
    $region35: #{tpu_custom_call.1} parent=1 // pred_check_branch
      %64 = sbr.rel (0) target = $region37
    $region36: #{tpu_custom_call.1} parent=1 // pred_region
      _
    $region37: #{tpu_custom_call.1} parent=1 // pred_fallthru
      _
    // Predicated region
    $region38: #{tpu_custom_call.1} parent=1 // pred_check
      _
    $region39: #{tpu_custom_call.1} parent=1 // pred_check_branch
      %66 = sbr.rel (0) target = $region41
    $region40: #{tpu_custom_call.1} parent=1 // pred_region
      %67 = dma.done [#allocation3], 1024
    $region41: #{tpu_custom_call.1} parent=1 // pred_fallthru
      _
    // Predicated region
    $region42: #{tpu_custom_call.1} parent=1 // pred_check
      _
    $region43: #{tpu_custom_call.1} parent=1 // pred_check_branch
      %69 = sbr.rel (0) target = $region45
    $region44: #{tpu_custom_call.1} parent=1 // pred_region
      %70 = dma.done [#allocation6], 1024
    $region45: #{tpu_custom_call.1} parent=1 // pred_fallthru
      _
    // Predicated region
    $region46: #{tpu_custom_call.1} parent=1 // pred_check
      _
    $region47: #{tpu_custom_call.1} parent=1 // pred_check_branch
      %72 = sbr.rel (0) target = $region49
    $region48: #{tpu_custom_call.1} parent=1 // pred_region
      %73 = dma.done [#allocation6], 7168
    $region49: #{tpu_custom_call.1} parent=1 // pred_fallthru
      _
    %v75 = vld [vmem:[%s1] sm:$0xf]
    %v76 = vld [vmem:[%s1 + $0x4] sm:$0xf]
    %v77 = vld [vmem:[%s0] sm:$0xff]
    %v78 = vld [vmem:[%s0 + $0x8] sm:$0xff]
    %v79 = vlaneseq
    %v80 = vand.u32 %v79, 127
    %81 = vset.pattern.permute.xlu0 0
    %82 = vperm.xlu0 %81, %v77
    %v83 = vpop.permute.xlu0 %82
    %84 = vset.pattern.permute.xlu0 0
    %85 = vperm.xlu0 %84, %v78
    %v86 = vpop.permute.xlu0 %85
    %vm87 = vcmp.eq.s32.totalorder %v80, %v83
    %vm88 = vcmp.eq.s32.totalorder %v80, %v86
    %v89 = vsel %vm87, 1, 0
    %v90 = vsel %vm88, 1, 0
    %v91 = vcvt.s32.f32 %v89
    %v92 = vcvt.s32.f32 %v90
    %v93 = vpack.c.bf16 %v92, %v91
    %v94 = vld [vmem:[%s2] sm:$0xf]
    %v95 = vld [vmem:[%s2 + $0x4] sm:$0xf]
    %v96 = vld [vmem:[#allocation2] sm:$0xf]
    %v97 = vld [vmem:[#allocation2 + $0x4] sm:$0xf]
    %v98 = vld [vmem:[#allocation2 + $0x8] sm:$0xf]
    %v99 = vld [vmem:[#allocation2 + $0xc] sm:$0xf]
    %v100 = vld [vmem:[#allocation2 + $0x10] sm:$0xf]
    %v101 = vld [vmem:[#allocation2 + $0x14] sm:$0xf]
    %v102 = vld [vmem:[#allocation2 + $0x18] sm:$0xf]
    %v103 = vld [vmem:[#allocation2 + $0x1c] sm:$0xf]
    %v104 = vld [vmem:[#allocation2 + $0x20] sm:$0xf]
    %v105 = vld [vmem:[#allocation2 + $0x24] sm:$0xf]
    %v106 = vld [vmem:[#allocation2 + $0x28] sm:$0xf]
    %v107 = vld [vmem:[#allocation2 + $0x2c] sm:$0xf]
    %v108 = vld [vmem:[#allocation2 + $0x30] sm:$0xf]
    %v109 = vld [vmem:[#allocation2 + $0x34] sm:$0xf]
    %v110 = vld [vmem:[#allocation2 + $0x38] sm:$0xf]
    %v111 = vld [vmem:[#allocation2 + $0x3c] sm:$0xf]
    %v128 = vunpack.c.l.b16 %v96
    %v129 = vunpack.c.l.b16 %v97
    %v130 = vunpack.c.l.b16 %v98
    %v131 = vunpack.c.l.b16 %v99
    %v132 = vunpack.c.l.b16 %v100
    %v133 = vunpack.c.l.b16 %v101
    %v134 = vunpack.c.l.b16 %v102
    %v135 = vunpack.c.l.b16 %v103
    %v136 = vunpack.c.l.b16 %v104
    %v137 = vunpack.c.l.b16 %v105
    %v138 = vunpack.c.l.b16 %v106
    %v139 = vunpack.c.l.b16 %v107
    %v140 = vunpack.c.l.b16 %v108
    %v141 = vunpack.c.l.b16 %v109
    %v142 = vunpack.c.l.b16 %v110
    %v143 = vunpack.c.l.b16 %v111
    %v144 = vpack.c.b16 %v129, %v128
    %v145 = vpack.c.b16 %v131, %v130
    %v146 = vpack.c.b16 %v133, %v132
    %v147 = vpack.c.b16 %v135, %v134
    %v148 = vpack.c.b16 %v137, %v136
    %v149 = vpack.c.b16 %v139, %v138
    %v150 = vpack.c.b16 %v141, %v140
    %v151 = vpack.c.b16 %v143, %v142
    %160 = vmatprep.subr.bf16.mxu0 0
    %161 = vmatpush1.bf16.msra.mxu0 %v144
    %162 = vmatprep.subr.bf16.mxu0 0
    %163 = vmatpush1.bf16.msra.mxu0 %v145
    %164 = vmatprep.subr.bf16.mxu0 0
    %165 = vmatpush1.bf16.msra.mxu0 %v146
    %166 = vmatprep.subr.bf16.mxu0 0
    %167 = vmatpush1.bf16.msra.mxu0 %v147
    %168 = vmatprep.subr.bf16.mxu0 0
    %169 = vmatpush1.bf16.msra.mxu0 %v148
    %170 = vmatprep.subr.bf16.mxu0 0
    %171 = vmatpush1.bf16.msra.mxu0 %v149
    %172 = vmatprep.subr.bf16.mxu0 0
    %173 = vmatpush1.bf16.msra.mxu0 %v150
    %174 = vmatprep.subr.bf16.mxu0 0
    %175 = vmatpush1.bf16.msra.mxu0 %v151
    %176 = vmatprep.subr.bf16.mxu0 0
    %177 = vmatpush1.bf16.msra.mxu0 0
    %178 = vmatprep.subr.bf16.mxu0 0
    %179 = vmatpush1.bf16.msra.mxu0 0
    %180 = vmatprep.subr.bf16.mxu0 0
    %181 = vmatpush1.bf16.msra.mxu0 0
    %182 = vmatprep.subr.bf16.mxu0 0
    %183 = vmatpush1.bf16.msra.mxu0 0
    %184 = vmatprep.subr.bf16.mxu0 0
    %185 = vmatpush1.bf16.msra.mxu0 0
    %186 = vmatprep.subr.bf16.mxu0 0
    %187 = vmatpush1.bf16.msra.mxu0 0
    %188 = vmatprep.subr.bf16.mxu0 0
    %189 = vmatpush1.bf16.msra.mxu0 0
    %190 = vmatprep.subr.bf16.mxu0 0
    %191 = vmatpush1.bf16.msra.mxu0 0
    %192 = vmatprep.mubr.bf16.mxu0 0
    %193 = vmatmul.mubr.bf16.gmra.mrb[0].mxu0 %v93
    %v194 = vpop.f32.mrb[0].mxu0
    %v195 = vadd.f32 0.0, %v194
    %v196 = vpop.f32.mrb[0].mxu0
    %v197 = vpop.f32.mrb[0].mxu0
    %v198 = vadd.f32 0.0, %v197
    %v199 = vpop.f32.mrb[0].mxu0
    %200 = vdwg.mxu0
    %v203 = vunpack.c.l.b16 %v75
    %v204 = vunpack.c.l.b16 %v76
    %v205 = vpack.c.b16 %v204, %v203
    %v208 = vunpack.c.l.b16 %v94
    %v209 = vunpack.c.l.b16 %v95
    %v210 = vpack.c.b16 %v209, %v208
    %vm212 = vcmask 130048
    %v214 = vsel %vm212, %v205, 0
    %216 = vmatprep.subr.bf16.mxu0 0
    %217 = vmatpush1.bf16.msra.mxu0 %v210
    %218 = vmatprep.subr.bf16.mxu0 0
    %219 = vmatpush1.bf16.msra.mxu0 0
    %220 = vmatprep.subr.bf16.mxu0 0
    %221 = vmatpush1.bf16.msra.mxu0 0
    %222 = vmatprep.subr.bf16.mxu0 0
    %223 = vmatpush1.bf16.msra.mxu0 0
    %224 = vmatprep.subr.bf16.mxu0 0
    %225 = vmatpush1.bf16.msra.mxu0 0
    %226 = vmatprep.subr.bf16.mxu0 0
    %227 = vmatpush1.bf16.msra.mxu0 0
    %228 = vmatprep.subr.bf16.mxu0 0
    %229 = vmatpush1.bf16.msra.mxu0 0
    %230 = vmatprep.subr.bf16.mxu0 0
    %231 = vmatpush1.bf16.msra.mxu0 0
    %232 = vmatprep.subr.bf16.mxu0 0
    %233 = vmatpush1.bf16.msra.mxu0 0
    %234 = vmatprep.subr.bf16.mxu0 0
    %235 = vmatpush1.bf16.msra.mxu0 0
    %236 = vmatprep.subr.bf16.mxu0 0
    %237 = vmatpush1.bf16.msra.mxu0 0
    %238 = vmatprep.subr.bf16.mxu0 0
    %239 = vmatpush1.bf16.msra.mxu0 0
    %240 = vmatprep.subr.bf16.mxu0 0
    %241 = vmatpush1.bf16.msra.mxu0 0
    %242 = vmatprep.subr.bf16.mxu0 0
    %243 = vmatpush1.bf16.msra.mxu0 0
    %244 = vmatprep.subr.bf16.mxu0 0
    %245 = vmatpush1.bf16.msra.mxu0 0
    %246 = vmatprep.subr.bf16.mxu0 0
    %247 = vmatpush1.bf16.msra.mxu0 0
    %248 = vmatprep.mubr.bf16.mxu0 0
    %249 = vmatmul.mubr.bf16.gmra.mrb[0].mxu0 %v214
    %v250 = vpop.f32.mrb[0].mxu0
    %v251 = vadd.f32 %v195, %v250
    %v252 = vpop.f32.mrb[0].mxu0
    %v253 = vpop.f32.mrb[0].mxu0
    %v254 = vadd.f32 %v198, %v253
    %v255 = vpop.f32.mrb[0].mxu0
    %256 = vdwg.mxu0
    %v257 = vld [vmem:[%s4] sm:$0x1]
    %v259 = vlaneseq
    %v260 = vshrl.u32 %v259, 7
    %v261 = vsub.s32 0, %v260
    %v262 = vrot.slane %v257, %v261
    %v264 = vadd.f32 %v251, %v262
    %v265 = vadd.f32 %v254, %v262
    %v266 = vmax.f32 %v264, 0.0
    %v267 = vmax.f32 %v265, 0.0
    %v268 = vpack.c.bf16 %v267, %v266
    %v269 = vld [vmem:[#allocation5] sm:$0xf]
    %v270 = vld [vmem:[#allocation5 + $0x4] sm:$0xf]
    %v271 = vld [vmem:[#allocation5 + $0x8] sm:$0xf]
    %v272 = vld [vmem:[#allocation5 + $0xc] sm:$0xf]
    %v273 = vld [vmem:[#allocation5 + $0x10] sm:$0xf]
    %v274 = vld [vmem:[#allocation5 + $0x14] sm:$0xf]
    %v275 = vld [vmem:[#allocation5 + $0x18] sm:$0xf]
    %v276 = vld [vmem:[#allocation5 + $0x1c] sm:$0xf]
    %v277 = vld [vmem:[#allocation5 + $0x20] sm:$0xf]
    %v278 = vld [vmem:[#allocation5 + $0x24] sm:$0xf]
    %v279 = vld [vmem:[#allocation5 + $0x28] sm:$0xf]
    %v280 = vld [vmem:[#allocation5 + $0x2c] sm:$0xf]
    %v281 = vld [vmem:[#allocation5 + $0x30] sm:$0xf]
    %v282 = vld [vmem:[#allocation5 + $0x34] sm:$0xf]
    %v283 = vld [vmem:[#allocation5 + $0x38] sm:$0xf]
    %v284 = vld [vmem:[#allocation5 + $0x3c] sm:$0xf]
    %v285 = vld [vmem:[%s6] sm:$0x1]
    %v287 = vlaneseq
    %v288 = vshrl.u32 %v287, 7
    %v289 = vsub.s32 0, %v288
    %v290 = vrot.slane %v285, %v289
    %v308 = vunpack.c.l.b16 %v269
    %v309 = vunpack.c.l.b16 %v270
    %v310 = vunpack.c.l.b16 %v271
    %v311 = vunpack.c.l.b16 %v272
    %v312 = vunpack.c.l.b16 %v273
    %v313 = vunpack.c.l.b16 %v274
    %v314 = vunpack.c.l.b16 %v275
    %v315 = vunpack.c.l.b16 %v276
    %v316 = vunpack.c.l.b16 %v277
    %v317 = vunpack.c.l.b16 %v278
    %v318 = vunpack.c.l.b16 %v279
    %v319 = vunpack.c.l.b16 %v280
    %v320 = vunpack.c.l.b16 %v281
    %v321 = vunpack.c.l.b16 %v282
    %v322 = vunpack.c.l.b16 %v283
    %v323 = vunpack.c.l.b16 %v284
    %v324 = vpack.c.b16 %v309, %v308
    %v325 = vpack.c.b16 %v311, %v310
    %v326 = vpack.c.b16 %v313, %v312
    %v327 = vpack.c.b16 %v315, %v314
    %v328 = vpack.c.b16 %v317, %v316
    %v329 = vpack.c.b16 %v319, %v318
    %v330 = vpack.c.b16 %v321, %v320
    %v331 = vpack.c.b16 %v323, %v322
    %340 = vmatprep.subr.bf16.mxu0 0
    %341 = vmatpush1.bf16.msra.mxu0 %v324
    %342 = vmatprep.subr.bf16.mxu0 0
    %343 = vmatpush1.bf16.msra.mxu0 %v325
    %344 = vmatprep.subr.bf16.mxu0 0
    %345 = vmatpush1.bf16.msra.mxu0 %v326
    %346 = vmatprep.subr.bf16.mxu0 0
    %347 = vmatpush1.bf16.msra.mxu0 %v327
    %348 = vmatprep.subr.bf16.mxu0 0
    %349 = vmatpush1.bf16.msra.mxu0 %v328
    %350 = vmatprep.subr.bf16.mxu0 0
    %351 = vmatpush1.bf16.msra.mxu0 %v329
    %352 = vmatprep.subr.bf16.mxu0 0
    %353 = vmatpush1.bf16.msra.mxu0 %v330
    %354 = vmatprep.subr.bf16.mxu0 0
    %355 = vmatpush1.bf16.msra.mxu0 %v331
    %356 = vmatprep.subr.bf16.mxu0 0
    %357 = vmatpush1.bf16.msra.mxu0 0
    %358 = vmatprep.subr.bf16.mxu0 0
    %359 = vmatpush1.bf16.msra.mxu0 0
    %360 = vmatprep.subr.bf16.mxu0 0
    %361 = vmatpush1.bf16.msra.mxu0 0
    %362 = vmatprep.subr.bf16.mxu0 0
    %363 = vmatpush1.bf16.msra.mxu0 0
    %364 = vmatprep.subr.bf16.mxu0 0
    %365 = vmatpush1.bf16.msra.mxu0 0
    %366 = vmatprep.subr.bf16.mxu0 0
    %367 = vmatpush1.bf16.msra.mxu0 0
    %368 = vmatprep.subr.bf16.mxu0 0
    %369 = vmatpush1.bf16.msra.mxu0 0
    %370 = vmatprep.subr.bf16.mxu0 0
    %371 = vmatpush1.bf16.msra.mxu0 0
    %372 = vmatprep.mubr.bf16.mxu0 0
    %373 = vmatmul.mubr.bf16.gmra.mrb[0].mxu0 %v268
    %v374 = vpop.f32.mrb[0].mxu0
    %v375 = vadd.f32 %v290, %v374
    %v376 = vpop.f32.mrb[0].mxu0
    %v377 = vpop.f32.mrb[0].mxu0
    %v378 = vadd.f32 %v290, %v377
    %v379 = vpop.f32.mrb[0].mxu0
    %380 = vdwg.mxu0
    %v381 = vmax.f32 %v375, 0.0
    %v382 = vmax.f32 %v378, 0.0
    %v383 = vpack.c.bf16 %v382, %v381
    %v384 = vld [vmem:[#allocation7] sm:$0xff]
    %v385 = vld [vmem:[#allocation7 + $0x8] sm:$0xff]
    %v386 = vld [vmem:[#allocation7 + $0x10] sm:$0xff]
    %v387 = vld [vmem:[#allocation7 + $0x18] sm:$0xf]
    %v388 = vld [vmem:[#allocation7 + $0x1c] sm:$0xff]
    %v389 = vld [vmem:[#allocation7 + $0x24] sm:$0xff]
    %v390 = vld [vmem:[#allocation7 + $0x2c] sm:$0xff]
    %v391 = vld [vmem:[#allocation7 + $0x34] sm:$0xf]
    %v392 = vld [vmem:[#allocation7 + $0x38] sm:$0xff]
    %v393 = vld [vmem:[#allocation7 + $0x40] sm:$0xff]
    %v394 = vld [vmem:[#allocation7 + $0x48] sm:$0xff]
    %v395 = vld [vmem:[#allocation7 + $0x50] sm:$0xf]
    %v396 = vld [vmem:[#allocation7 + $0x54] sm:$0xff]
    %v397 = vld [vmem:[#allocation7 + $0x5c] sm:$0xff]
    %v398 = vld [vmem:[#allocation7 + $0x64] sm:$0xff]
    %v399 = vld [vmem:[#allocation7 + $0x6c] sm:$0xf]
    %v400 = vld [vmem:[#allocation7 + $0x70] sm:$0xff]
    %v401 = vld [vmem:[#allocation7 + $0x78] sm:$0xff]
    %v402 = vld [vmem:[#allocation7 + $0x80] sm:$0xff]
    %v403 = vld [vmem:[#allocation7 + $0x88] sm:$0xf]
    %v404 = vld [vmem:[#allocation7 + $0x8c] sm:$0xff]
    %v405 = vld [vmem:[#allocation7 + $0x94] sm:$0xff]
    %v406 = vld [vmem:[#allocation7 + $0x9c] sm:$0xff]
    %v407 = vld [vmem:[#allocation7 + $0xa4] sm:$0xf]
    %v408 = vld [vmem:[#allocation7 + $0xa8] sm:$0xff]
    %v409 = vld [vmem:[#allocation7 + $0xb0] sm:$0xff]
    %v410 = vld [vmem:[#allocation7 + $0xb8] sm:$0xff]
    %v411 = vld [vmem:[#allocation7 + $0xc0] sm:$0xf]
    %v412 = vld [vmem:[#allocation7 + $0xc4] sm:$0xff]
    %v413 = vld [vmem:[#allocation7 + $0xcc] sm:$0xff]
    %v414 = vld [vmem:[#allocation7 + $0xd4] sm:$0xff]
    %v415 = vld [vmem:[#allocation7 + $0xdc] sm:$0xf]
    %v416 = vld [vmem:[#allocation7 + $0xe0] sm:$0xff]
    %v417 = vld [vmem:[#allocation7 + $0xe8] sm:$0xff]
    %v418 = vld [vmem:[#allocation7 + $0xf0] sm:$0xff]
    %v419 = vld [vmem:[#allocation7 + $0xf8] sm:$0xf]
    %v420 = vld [vmem:[#allocation7 + $0xfc] sm:$0xff]
    %v421 = vld [vmem:[#allocation7 + $0x104] sm:$0xff]
    %v422 = vld [vmem:[#allocation7 + $0x10c] sm:$0xff]
    %v423 = vld [vmem:[#allocation7 + $0x114] sm:$0xf]
    %v424 = vld [vmem:[#allocation7 + $0x118] sm:$0xff]
    %v425 = vld [vmem:[#allocation7 + $0x120] sm:$0xff]
    %v426 = vld [vmem:[#allocation7 + $0x128] sm:$0xff]
    %v427 = vld [vmem:[#allocation7 + $0x130] sm:$0xf]
    %v428 = vld [vmem:[#allocation7 + $0x134] sm:$0xff]
    %v429 = vld [vmem:[#allocation7 + $0x13c] sm:$0xff]
    %v430 = vld [vmem:[#allocation7 + $0x144] sm:$0xff]
    %v431 = vld [vmem:[#allocation7 + $0x14c] sm:$0xf]
    %v432 = vld [vmem:[#allocation7 + $0x150] sm:$0xff]
    %v433 = vld [vmem:[#allocation7 + $0x158] sm:$0xff]
    %v434 = vld [vmem:[#allocation7 + $0x160] sm:$0xff]
    %v435 = vld [vmem:[#allocation7 + $0x168] sm:$0xf]
    %v436 = vld [vmem:[#allocation7 + $0x16c] sm:$0xff]
    %v437 = vld [vmem:[#allocation7 + $0x174] sm:$0xff]
    %v438 = vld [vmem:[#allocation7 + $0x17c] sm:$0xff]
    %v439 = vld [vmem:[#allocation7 + $0x184] sm:$0xf]
    %v440 = vld [vmem:[#allocation7 + $0x188] sm:$0xff]
    %v441 = vld [vmem:[#allocation7 + $0x190] sm:$0xff]
    %v442 = vld [vmem:[#allocation7 + $0x198] sm:$0xff]
    %v443 = vld [vmem:[#allocation7 + $0x1a0] sm:$0xf]
    %v444 = vld [vmem:[#allocation7 + $0x1a4] sm:$0xff]
    %v445 = vld [vmem:[#allocation7 + $0x1ac] sm:$0xff]
    %v446 = vld [vmem:[#allocation7 + $0x1b4] sm:$0xff]
    %v447 = vld [vmem:[#allocation7 + $0x1bc] sm:$0xf]
    %v448 = vld [vmem:[%s8] sm:$0xff]
    %v450 = vlaneseq
    %v451 = vshrl.u32 %v450, 7
    %v452 = vsub.s32 0, %v451
    %v453 = vrot.slane %v448, %v452
    %v454 = vlaneseq
    %v455 = vshrl.u32 %v454, 7
    %v456 = vsub.s32 1, %v455
    %v457 = vrot.slane %v448, %v456
    %v458 = vlaneseq
    %v459 = vshrl.u32 %v458, 7
    %v460 = vsub.s32 2, %v459
    %v461 = vrot.slane %v448, %v460
    %v462 = vlaneseq
    %v463 = vshrl.u32 %v462, 7
    %v464 = vsub.s32 3, %v463
    %v465 = vrot.slane %v448, %v464
    %v466 = vlaneseq
    %v467 = vshrl.u32 %v466, 7
    %v468 = vsub.s32 4, %v467
    %v469 = vrot.slane %v448, %v468
    %v470 = vlaneseq
    %v471 = vshrl.u32 %v470, 7
    %v472 = vsub.s32 5, %v471
    %v473 = vrot.slane %v448, %v472
    %v474 = vlaneseq
    %v475 = vshrl.u32 %v474, 7
    %v476 = vsub.s32 6, %v475
    %v477 = vrot.slane %v448, %v476
    %v549 = vunpack.c.l.b16 %v384
    %v550 = vunpack.c.h.b16 %v384
    %v551 = vunpack.c.l.b16 %v385
    %v552 = vunpack.c.h.b16 %v385
    %v553 = vunpack.c.l.b16 %v386
    %v554 = vunpack.c.h.b16 %v386
    %v555 = vunpack.c.l.b16 %v387
    %v556 = vunpack.c.l.b16 %v388
    %v557 = vunpack.c.h.b16 %v388
    %v558 = vunpack.c.l.b16 %v389
    %v559 = vunpack.c.h.b16 %v389
    %v560 = vunpack.c.l.b16 %v390
    %v561 = vunpack.c.h.b16 %v390
    %v562 = vunpack.c.l.b16 %v391
    %v563 = vunpack.c.l.b16 %v392
    %v564 = vunpack.c.h.b16 %v392
    %v565 = vunpack.c.l.b16 %v393
    %v566 = vunpack.c.h.b16 %v393
    %v567 = vunpack.c.l.b16 %v394
    %v568 = vunpack.c.h.b16 %v394
    %v569 = vunpack.c.l.b16 %v395
    %v570 = vunpack.c.l.b16 %v396
    %v571 = vunpack.c.h.b16 %v396
    %v572 = vunpack.c.l.b16 %v397
    %v573 = vunpack.c.h.b16 %v397
    %v574 = vunpack.c.l.b16 %v398
    %v575 = vunpack.c.h.b16 %v398
    %v576 = vunpack.c.l.b16 %v399
    %v577 = vunpack.c.l.b16 %v400
    %v578 = vunpack.c.h.b16 %v400
    %v579 = vunpack.c.l.b16 %v401
    %v580 = vunpack.c.h.b16 %v401
    %v581 = vunpack.c.l.b16 %v402
    %v582 = vunpack.c.h.b16 %v402
    %v583 = vunpack.c.l.b16 %v403
    %v584 = vunpack.c.l.b16 %v404
    %v585 = vunpack.c.h.b16 %v404
    %v586 = vunpack.c.l.b16 %v405
    %v587 = vunpack.c.h.b16 %v405
    %v588 = vunpack.c.l.b16 %v406
    %v589 = vunpack.c.h.b16 %v406
    %v590 = vunpack.c.l.b16 %v407
    %v591 = vunpack.c.l.b16 %v408
    %v592 = vunpack.c.h.b16 %v408
    %v593 = vunpack.c.l.b16 %v409
    %v594 = vunpack.c.h.b16 %v409
    %v595 = vunpack.c.l.b16 %v410
    %v596 = vunpack.c.h.b16 %v410
    %v597 = vunpack.c.l.b16 %v411
    %v598 = vunpack.c.l.b16 %v412
    %v599 = vunpack.c.h.b16 %v412
    %v600 = vunpack.c.l.b16 %v413
    %v601 = vunpack.c.h.b16 %v413
    %v602 = vunpack.c.l.b16 %v414
    %v603 = vunpack.c.h.b16 %v414
    %v604 = vunpack.c.l.b16 %v415
    %v605 = vunpack.c.l.b16 %v416
    %v606 = vunpack.c.h.b16 %v416
    %v607 = vunpack.c.l.b16 %v417
    %v608 = vunpack.c.h.b16 %v417
    %v609 = vunpack.c.l.b16 %v418
    %v610 = vunpack.c.h.b16 %v418
    %v611 = vunpack.c.l.b16 %v419
    %v612 = vunpack.c.l.b16 %v420
    %v613 = vunpack.c.h.b16 %v420
    %v614 = vunpack.c.l.b16 %v421
    %v615 = vunpack.c.h.b16 %v421
    %v616 = vunpack.c.l.b16 %v422
    %v617 = vunpack.c.h.b16 %v422
    %v618 = vunpack.c.l.b16 %v423
    %v619 = vunpack.c.l.b16 %v424
    %v620 = vunpack.c.h.b16 %v424
    %v621 = vunpack.c.l.b16 %v425
    %v622 = vunpack.c.h.b16 %v425
    %v623 = vunpack.c.l.b16 %v426
    %v624 = vunpack.c.h.b16 %v426
    %v625 = vunpack.c.l.b16 %v427
    %v626 = vunpack.c.l.b16 %v428
    %v627 = vunpack.c.h.b16 %v428
    %v628 = vunpack.c.l.b16 %v429
    %v629 = vunpack.c.h.b16 %v429
    %v630 = vunpack.c.l.b16 %v430
    %v631 = vunpack.c.h.b16 %v430
    %v632 = vunpack.c.l.b16 %v431
    %v633 = vunpack.c.l.b16 %v432
    %v634 = vunpack.c.h.b16 %v432
    %v635 = vunpack.c.l.b16 %v433
    %v636 = vunpack.c.h.b16 %v433
    %v637 = vunpack.c.l.b16 %v434
    %v638 = vunpack.c.h.b16 %v434
    %v639 = vunpack.c.l.b16 %v435
    %v640 = vunpack.c.l.b16 %v436
    %v641 = vunpack.c.h.b16 %v436
    %v642 = vunpack.c.l.b16 %v437
    %v643 = vunpack.c.h.b16 %v437
    %v644 = vunpack.c.l.b16 %v438
    %v645 = vunpack.c.h.b16 %v438
    %v646 = vunpack.c.l.b16 %v439
    %v647 = vunpack.c.l.b16 %v440
    %v648 = vunpack.c.h.b16 %v440
    %v649 = vunpack.c.l.b16 %v441
    %v650 = vunpack.c.h.b16 %v441
    %v651 = vunpack.c.l.b16 %v442
    %v652 = vunpack.c.h.b16 %v442
    %v653 = vunpack.c.l.b16 %v443
    %v654 = vunpack.c.l.b16 %v444
    %v655 = vunpack.c.h.b16 %v444
    %v656 = vunpack.c.l.b16 %v445
    %v657 = vunpack.c.h.b16 %v445
    %v658 = vunpack.c.l.b16 %v446
    %v659 = vunpack.c.h.b16 %v446
    %v660 = vunpack.c.l.b16 %v447
    %v661 = vpack.c.b16 %v556, %v549
    %v662 = vpack.c.b16 %v557, %v550
    %v663 = vpack.c.b16 %v558, %v551
    %v664 = vpack.c.b16 %v559, %v552
    %v665 = vpack.c.b16 %v560, %v553
    %v666 = vpack.c.b16 %v561, %v554
    %v667 = vpack.c.b16 %v562, %v555
    %v668 = vpack.c.b16 %v570, %v563
    %v669 = vpack.c.b16 %v571, %v564
    %v670 = vpack.c.b16 %v572, %v565
    %v671 = vpack.c.b16 %v573, %v566
    %v672 = vpack.c.b16 %v574, %v567
    %v673 = vpack.c.b16 %v575, %v568
    %v674 = vpack.c.b16 %v576, %v569
    %v675 = vpack.c.b16 %v584, %v577
    %v676 = vpack.c.b16 %v585, %v578
    %v677 = vpack.c.b16 %v586, %v579
    %v678 = vpack.c.b16 %v587, %v580
    %v679 = vpack.c.b16 %v588, %v581
    %v680 = vpack.c.b16 %v589, %v582
    %v681 = vpack.c.b16 %v590, %v583
    %v682 = vpack.c.b16 %v598, %v591
    %v683 = vpack.c.b16 %v599, %v592
    %v684 = vpack.c.b16 %v600, %v593
    %v685 = vpack.c.b16 %v601, %v594
    %v686 = vpack.c.b16 %v602, %v595
    %v687 = vpack.c.b16 %v603, %v596
    %v688 = vpack.c.b16 %v604, %v597
    %v689 = vpack.c.b16 %v612, %v605
    %v690 = vpack.c.b16 %v613, %v606
    %v691 = vpack.c.b16 %v614, %v607
    %v692 = vpack.c.b16 %v615, %v608
    %v693 = vpack.c.b16 %v616, %v609
    %v694 = vpack.c.b16 %v617, %v610
    %v695 = vpack.c.b16 %v618, %v611
    %v696 = vpack.c.b16 %v626, %v619
    %v697 = vpack.c.b16 %v627, %v620
    %v698 = vpack.c.b16 %v628, %v621
    %v699 = vpack.c.b16 %v629, %v622
    %v700 = vpack.c.b16 %v630, %v623
    %v701 = vpack.c.b16 %v631, %v624
    %v702 = vpack.c.b16 %v632, %v625
    %v703 = vpack.c.b16 %v640, %v633
    %v704 = vpack.c.b16 %v641, %v634
    %v705 = vpack.c.b16 %v642, %v635
    %v706 = vpack.c.b16 %v643, %v636
    %v707 = vpack.c.b16 %v644, %v637
    %v708 = vpack.c.b16 %v645, %v638
    %v709 = vpack.c.b16 %v646, %v639
    %v710 = vpack.c.b16 %v654, %v647
    %v711 = vpack.c.b16 %v655, %v648
    %v712 = vpack.c.b16 %v656, %v649
    %v713 = vpack.c.b16 %v657, %v650
    %v714 = vpack.c.b16 %v658, %v651
    %v715 = vpack.c.b16 %v659, %v652
    %v716 = vpack.c.b16 %v660, %v653
    %773 = vmatprep.subr.bf16.mxu0 %v662
    %774 = vmatpush1.bf16.msra.mxu0 %v661
    %775 = vmatprep.subr.bf16.mxu0 %v669
    %776 = vmatpush1.bf16.msra.mxu0 %v668
    %777 = vmatprep.subr.bf16.mxu0 %v676
    %778 = vmatpush1.bf16.msra.mxu0 %v675
    %779 = vmatprep.subr.bf16.mxu0 %v683
    %780 = vmatpush1.bf16.msra.mxu0 %v682
    %781 = vmatprep.subr.bf16.mxu0 %v690
    %782 = vmatpush1.bf16.msra.mxu0 %v689
    %783 = vmatprep.subr.bf16.mxu0 %v697
    %784 = vmatpush1.bf16.msra.mxu0 %v696
    %785 = vmatprep.subr.bf16.mxu0 %v704
    %786 = vmatpush1.bf16.msra.mxu0 %v703
    %787 = vmatprep.subr.bf16.mxu0 %v711
    %788 = vmatpush1.bf16.msra.mxu0 %v710
    %789 = vmatprep.subr.bf16.mxu0 0
    %790 = vmatpush1.bf16.msra.mxu0 0
    %791 = vmatprep.subr.bf16.mxu0 0
    %792 = vmatpush1.bf16.msra.mxu0 0
    %793 = vmatprep.subr.bf16.mxu0 0
    %794 = vmatpush1.bf16.msra.mxu0 0
    %795 = vmatprep.subr.bf16.mxu0 0
    %796 = vmatpush1.bf16.msra.mxu0 0
    %797 = vmatprep.subr.bf16.mxu0 0
    %798 = vmatpush1.bf16.msra.mxu0 0
    %799 = vmatprep.subr.bf16.mxu0 0
    %800 = vmatpush1.bf16.msra.mxu0 0
    %801 = vmatprep.subr.bf16.mxu0 0
    %802 = vmatpush1.bf16.msra.mxu0 0
    %803 = vmatprep.subr.bf16.mxu0 0
    %804 = vmatpush1.bf16.msra.mxu0 0
    %805 = vmatprep.mubr.bf16.mxu0 0
    %806 = vmatmul.mubr.bf16.gmra.mrb[0].mxu0 %v383
    %v807 = vpop.f32.mrb[0].mxu0
    %v808 = vadd.f32 %v453, %v807
    %v809 = vpop.f32.mrb[0].mxu0
    %v810 = vadd.f32 %v457, %v809
    %v811 = vpop.f32.mrb[0].mxu0
    %v812 = vadd.f32 %v453, %v811
    %v813 = vpop.f32.mrb[0].mxu0
    %v814 = vadd.f32 %v457, %v813
    %815 = vdwg.mxu0
    %816 = vmatprep.subr.bf16.mxu0 %v664
    %817 = vmatpush1.bf16.msra.mxu0 %v663
    %818 = vmatprep.subr.bf16.mxu0 %v671
    %819 = vmatpush1.bf16.msra.mxu0 %v670
    %820 = vmatprep.subr.bf16.mxu0 %v678
    %821 = vmatpush1.bf16.msra.mxu0 %v677
    %822 = vmatprep.subr.bf16.mxu0 %v685
    %823 = vmatpush1.bf16.msra.mxu0 %v684
    %824 = vmatprep.subr.bf16.mxu0 %v692
    %825 = vmatpush1.bf16.msra.mxu0 %v691
    %826 = vmatprep.subr.bf16.mxu0 %v699
    %827 = vmatpush1.bf16.msra.mxu0 %v698
    %828 = vmatprep.subr.bf16.mxu0 %v706
    %829 = vmatpush1.bf16.msra.mxu0 %v705
    %830 = vmatprep.subr.bf16.mxu0 %v713
    %831 = vmatpush1.bf16.msra.mxu0 %v712
    %832 = vmatprep.subr.bf16.mxu0 0
    %833 = vmatpush1.bf16.msra.mxu0 0
    %834 = vmatprep.subr.bf16.mxu0 0
    %835 = vmatpush1.bf16.msra.mxu0 0
    %836 = vmatprep.subr.bf16.mxu0 0
    %837 = vmatpush1.bf16.msra.mxu0 0
    %838 = vmatprep.subr.bf16.mxu0 0
    %839 = vmatpush1.bf16.msra.mxu0 0
    %840 = vmatprep.subr.bf16.mxu0 0
    %841 = vmatpush1.bf16.msra.mxu0 0
    %842 = vmatprep.subr.bf16.mxu0 0
    %843 = vmatpush1.bf16.msra.mxu0 0
    %844 = vmatprep.subr.bf16.mxu0 0
    %845 = vmatpush1.bf16.msra.mxu0 0
    %846 = vmatprep.subr.bf16.mxu0 0
    %847 = vmatpush1.bf16.msra.mxu0 0
    %848 = vmatprep.mubr.bf16.mxu0 0
    %849 = vmatmul.mubr.bf16.gmra.mrb[0].mxu0 %v383
    %v850 = vpop.f32.mrb[0].mxu0
    %v851 = vadd.f32 %v461, %v850
    %v852 = vpop.f32.mrb[0].mxu0
    %v853 = vadd.f32 %v465, %v852
    %v854 = vpop.f32.mrb[0].mxu0
    %v855 = vadd.f32 %v461, %v854
    %v856 = vpop.f32.mrb[0].mxu0
    %v857 = vadd.f32 %v465, %v856
    %858 = vdwg.mxu0
    %859 = vmatprep.subr.bf16.mxu0 %v666
    %860 = vmatpush1.bf16.msra.mxu0 %v665
    %861 = vmatprep.subr.bf16.mxu0 %v673
    %862 = vmatpush1.bf16.msra.mxu0 %v672
    %863 = vmatprep.subr.bf16.mxu0 %v680
    %864 = vmatpush1.bf16.msra.mxu0 %v679
    %865 = vmatprep.subr.bf16.mxu0 %v687
    %866 = vmatpush1.bf16.msra.mxu0 %v686
    %867 = vmatprep.subr.bf16.mxu0 %v694
    %868 = vmatpush1.bf16.msra.mxu0 %v693
    %869 = vmatprep.subr.bf16.mxu0 %v701
    %870 = vmatpush1.bf16.msra.mxu0 %v700
    %871 = vmatprep.subr.bf16.mxu0 %v708
    %872 = vmatpush1.bf16.msra.mxu0 %v707
    %873 = vmatprep.subr.bf16.mxu0 %v715
    %874 = vmatpush1.bf16.msra.mxu0 %v714
    %875 = vmatprep.subr.bf16.mxu0 0
    %876 = vmatpush1.bf16.msra.mxu0 0
    %877 = vmatprep.subr.bf16.mxu0 0
    %878 = vmatpush1.bf16.msra.mxu0 0
    %879 = vmatprep.subr.bf16.mxu0 0
    %880 = vmatpush1.bf16.msra.mxu0 0
    %881 = vmatprep.subr.bf16.mxu0 0
    %882 = vmatpush1.bf16.msra.mxu0 0
    %883 = vmatprep.subr.bf16.mxu0 0
    %884 = vmatpush1.bf16.msra.mxu0 0
    %885 = vmatprep.subr.bf16.mxu0 0
    %886 = vmatpush1.bf16.msra.mxu0 0
    %887 = vmatprep.subr.bf16.mxu0 0
    %888 = vmatpush1.bf16.msra.mxu0 0
    %889 = vmatprep.subr.bf16.mxu0 0
    %890 = vmatpush1.bf16.msra.mxu0 0
    %891 = vmatprep.mubr.bf16.mxu0 0
    %892 = vmatmul.mubr.bf16.gmra.mrb[0].mxu0 %v383
    %v893 = vpop.f32.mrb[0].mxu0
    %v894 = vadd.f32 %v469, %v893
    %v895 = vpop.f32.mrb[0].mxu0
    %v896 = vadd.f32 %v473, %v895
    %v897 = vpop.f32.mrb[0].mxu0
    %v898 = vadd.f32 %v469, %v897
    %v899 = vpop.f32.mrb[0].mxu0
    %v900 = vadd.f32 %v473, %v899
    %901 = vdwg.mxu0
    %902 = vmatprep.subr.bf16.mxu0 0
    %903 = vmatpush1.bf16.msra.mxu0 %v667
    %904 = vmatprep.subr.bf16.mxu0 0
    %905 = vmatpush1.bf16.msra.mxu0 %v674
    %906 = vmatprep.subr.bf16.mxu0 0
    %907 = vmatpush1.bf16.msra.mxu0 %v681
    %908 = vmatprep.subr.bf16.mxu0 0
    %909 = vmatpush1.bf16.msra.mxu0 %v688
    %910 = vmatprep.subr.bf16.mxu0 0
    %911 = vmatpush1.bf16.msra.mxu0 %v695
    %912 = vmatprep.subr.bf16.mxu0 0
    %913 = vmatpush1.bf16.msra.mxu0 %v702
    %914 = vmatprep.subr.bf16.mxu0 0
    %915 = vmatpush1.bf16.msra.mxu0 %v709
    %916 = vmatprep.subr.bf16.mxu0 0
    %917 = vmatpush1.bf16.msra.mxu0 %v716
    %918 = vmatprep.subr.bf16.mxu0 0
    %919 = vmatpush1.bf16.msra.mxu0 0
    %920 = vmatprep.subr.bf16.mxu0 0
    %921 = vmatpush1.bf16.msra.mxu0 0
    %922 = vmatprep.subr.bf16.mxu0 0
    %923 = vmatpush1.bf16.msra.mxu0 0
    %924 = vmatprep.subr.bf16.mxu0 0
    %925 = vmatpush1.bf16.msra.mxu0 0
    %926 = vmatprep.subr.bf16.mxu0 0
    %927 = vmatpush1.bf16.msra.mxu0 0
    %928 = vmatprep.subr.bf16.mxu0 0
    %929 = vmatpush1.bf16.msra.mxu0 0
    %930 = vmatprep.subr.bf16.mxu0 0
    %931 = vmatpush1.bf16.msra.mxu0 0
    %932 = vmatprep.subr.bf16.mxu0 0
    %933 = vmatpush1.bf16.msra.mxu0 0
    %934 = vmatprep.mubr.bf16.mxu0 0
    %935 = vmatmul.mubr.bf16.gmra.mrb[0].mxu0 %v383
    %v936 = vpop.f32.mrb[0].mxu0
    %v937 = vadd.f32 %v477, %v936
    %v938 = vpop.f32.mrb[0].mxu0
    %v939 = vpop.f32.mrb[0].mxu0
    %v940 = vadd.f32 %v477, %v939
    %v941 = vpop.f32.mrb[0].mxu0
    %942 = vdwg.mxu0
    %v943 = vxor.u32 %v808, 2147483648
    %v944 = vxor.u32 %v810, 2147483648
    %v945 = vxor.u32 %v851, 2147483648
    %v946 = vxor.u32 %v853, 2147483648
    %v947 = vxor.u32 %v894, 2147483648
    %v948 = vxor.u32 %v896, 2147483648
    %v949 = vxor.u32 %v937, 2147483648
    %v950 = vxor.u32 %v812, 2147483648
    %v951 = vxor.u32 %v814, 2147483648
    %v952 = vxor.u32 %v855, 2147483648
    %v953 = vxor.u32 %v857, 2147483648
    %v954 = vxor.u32 %v898, 2147483648
    %v955 = vxor.u32 %v900, 2147483648
    %v956 = vxor.u32 %v940, 2147483648
    %v957 = vmul.f32 %v943, 1.442695
    %v958 = vpow.pop %v957
    %v959 = vmul.f32 %v944, 1.442695
    %v960 = vpow.pop %v959
    %v961 = vmul.f32 %v945, 1.442695
    %v962 = vpow.pop %v961
    %v963 = vmul.f32 %v946, 1.442695
    %v964 = vpow.pop %v963
    %v965 = vmul.f32 %v947, 1.442695
    %v966 = vpow.pop %v965
    %v967 = vmul.f32 %v948, 1.442695
    %v968 = vpow.pop %v967
    %v969 = vmul.f32 %v949, 1.442695
    %v970 = vpow.pop %v969
    %v971 = vmul.f32 %v950, 1.442695
    %v972 = vpow.pop %v971
    %v973 = vmul.f32 %v951, 1.442695
    %v974 = vpow.pop %v973
    %v975 = vmul.f32 %v952, 1.442695
    %v976 = vpow.pop %v975
    %v977 = vmul.f32 %v953, 1.442695
    %v978 = vpow.pop %v977
    %v979 = vmul.f32 %v954, 1.442695
    %v980 = vpow.pop %v979
    %v981 = vmul.f32 %v955, 1.442695
    %v982 = vpow.pop %v981
    %v983 = vmul.f32 %v956, 1.442695
    %v984 = vpow.pop %v983
    %v985 = vadd.f32 %v958, 1.0
    %v986 = vadd.f32 %v960, 1.0
    %v987 = vadd.f32 %v962, 1.0
    %v988 = vadd.f32 %v964, 1.0
    %v989 = vadd.f32 %v966, 1.0
    %v990 = vadd.f32 %v968, 1.0
    %v991 = vadd.f32 %v970, 1.0
    %v992 = vadd.f32 %v972, 1.0
    %v993 = vadd.f32 %v974, 1.0
    %v994 = vadd.f32 %v976, 1.0
    %v995 = vadd.f32 %v978, 1.0
    %v996 = vadd.f32 %v980, 1.0
    %v997 = vadd.f32 %v982, 1.0
    %v998 = vadd.f32 %v984, 1.0
    %v999 = vrcp.pop %v985
    %v1000 = vmul.f32 1.0, %v999
    %v1001 = vrcp.pop %v986
    %v1002 = vmul.f32 1.0, %v1001
    %v1003 = vrcp.pop %v987
    %v1004 = vmul.f32 1.0, %v1003
    %v1005 = vrcp.pop %v988
    %v1006 = vmul.f32 1.0, %v1005
    %v1007 = vrcp.pop %v989
    %v1008 = vmul.f32 1.0, %v1007
    %v1009 = vrcp.pop %v990
    %v1010 = vmul.f32 1.0, %v1009
    %v1011 = vrcp.pop %v991
    %v1012 = vmul.f32 1.0, %v1011
    %v1013 = vrcp.pop %v992
    %v1014 = vmul.f32 1.0, %v1013
    %v1015 = vrcp.pop %v993
    %v1016 = vmul.f32 1.0, %v1015
    %v1017 = vrcp.pop %v994
    %v1018 = vmul.f32 1.0, %v1017
    %v1019 = vrcp.pop %v995
    %v1020 = vmul.f32 1.0, %v1019
    %v1021 = vrcp.pop %v996
    %v1022 = vmul.f32 1.0, %v1021
    %v1023 = vrcp.pop %v997
    %v1024 = vmul.f32 1.0, %v1023
    %v1025 = vrcp.pop %v998
    %v1026 = vmul.f32 1.0, %v1025
    %1027 = vst [vmem:[#allocation8] sm:$0xff] %v1000
    %1028 = vst [vmem:[#allocation8 + $0x8] sm:$0xff] %v1002
    %1029 = vst [vmem:[#allocation8 + $0x10] sm:$0xff] %v1004
    %1030 = vst [vmem:[#allocation8 + $0x18] sm:$0xff] %v1006
    %1031 = vst [vmem:[#allocation8 + $0x20] sm:$0xff] %v1008
    %1032 = vst [vmem:[#allocation8 + $0x28] sm:$0xff] %v1010
    %1033 = vst.msk [vmem:[#allocation8 + $0x30] sm:$0xff] %vm212, %v1012
    %1034 = vst [vmem:[#allocation8 + $0x38] sm:$0xff] %v1014
    %1035 = vst [vmem:[#allocation8 + $0x40] sm:$0xff] %v1016
    %1036 = vst [vmem:[#allocation8 + $0x48] sm:$0xff] %v1018
    %1037 = vst [vmem:[#allocation8 + $0x50] sm:$0xff] %v1020
    %1038 = vst [vmem:[#allocation8 + $0x58] sm:$0xff] %v1022
    %1039 = vst [vmem:[#allocation8 + $0x60] sm:$0xff] %v1024
    %1040 = vst.msk [vmem:[#allocation8 + $0x68] sm:$0xff] %vm212, %v1026
    // Predicated region
    $region50: #{tpu_custom_call.1} parent=1 // pred_check
      _
    $region51: #{tpu_custom_call.1} parent=1 // pred_check_branch
      %1042 = sbr.rel (0) target = $region53
    $region52: #{tpu_custom_call.1} parent=1 // pred_region
      %s1044 = ssub.s32 1792, 1792
      %1045 = vsyncadd [#allocation4], %s1044
      %s1046 = sshll.u32 [#allocation8], 4
      %s1047 = int_to_ptr.vmem [resolvable:$true] %s1046
      %1052 = dma.vmem_to_hbm [thread:$0]  %s1047, 1792, %s9, [#allocation4], 896, 896, 56
    $region53: #{tpu_custom_call.1} parent=1 // pred_fallthru
      _
    // Predicated region
    $region54: #{tpu_custom_call.1} parent=1 // pred_check
      _
    $region55: #{tpu_custom_call.1} parent=1 // pred_check_branch
      %1054 = sbr.rel (0) target = $region57
    $region56: #{tpu_custom_call.1} parent=1 // pred_region
      %1055 = dma.done [#allocation4], 1792
    $region57: #{tpu_custom_call.1} parent=1 // pred_fallthru
      _
    %1056 = vsyncpa [#allocation3], 1
    %1057 = vsyncpa [#allocation6], 1
    %1058 = vsyncpa [#allocation4], 1

</llo_original>
